<compile_context>
chip_gen: v7x
topology: tpu7x:2x2x1
jax: 0.10.0
libtpu: 0.0.40
codegen_flags: <defaults>
</compile_context>

<pallas_src>
import functools

import jax
import jax.numpy as jnp
from jax.experimental import pallas as pl
from jax.experimental.pallas import tpu as pltpu

_LANE_WIDTHS = (1024, 512, 256, 128)      # candidate lane-dense slab widths
_TARGET_TILE_BYTES = 2 * 1024 * 1024      # ~2 MiB tile -> <= 8 MiB double-buffered
_MIN_STEPS = 4                            # >= 2 balanced pipelined steps per v7x core


def _cdiv(a: int, b: int) -> int:
    return -(-a // b)


def _round_up(x: int, m: int) -> int:
    return _cdiv(x, m) * m


def _sublane_multiple(dtype) -> int:
    return {4: 8, 2: 16, 1: 32}.get(jnp.dtype(dtype).itemsize, 8)


def _compute_dtype(dtype):
    # bf16 has native VPU/EUP support on v6e/v7x; computing in bf16 halves
    # vreg pressure and keeps the single EUP off the critical slot at high
    # HBM bandwidths.  Everything else computes in f32.
    return jnp.bfloat16 if jnp.dtype(dtype) == jnp.bfloat16 else jnp.float32


def _dispdec_kernel(x_ref, o_ref, *, compute_dtype):
    x = x_ref[...].astype(compute_dtype)
    # Numerically stable softplus: max(x, 0) + log1p(exp(-|x|)).
    # exp/log1p go to the EUP slot; max/add/clip on the VPU.
    sp = jnp.maximum(x, 0.0) + jnp.log1p(jnp.exp(-jnp.abs(x)))
    o_ref[...] = jnp.clip(sp, 1e-4, 1e4).astype(o_ref.dtype)


def _dispdec_ref(x: jax.Array) -> jax.Array:
    cd = _compute_dtype(x.dtype)
    xf = x.astype(cd)
    sp = jnp.maximum(xf, 0.0) + jnp.log1p(jnp.exp(-jnp.abs(xf)))
    return jnp.clip(sp, 1e-4, 1e4).astype(x.dtype)


def disp_dec(x: jax.Array, *, min_pallas_elems: int = 512 * 1024,
             donate: bool = False) -> jax.Array:
    """clamp(softplus(x), min=1e-4, max=1e4), matching torch semantics.

    `donate=True` lets the kernel output alias its input buffer (only set it
    when the caller no longer needs x).
    """
    orig_shape = x.shape
    dtype = x.dtype
    n = x.size
    if n == 0:
        return x

    # Widest lane width that divides n exactly -> no pad copy, no output slice.
    width = next((w for w in _LANE_WIDTHS if n % w == 0), None)

    # Small inputs, and sizes not divisible by 128: the XLA-fused elementwise
    # chain is already one read + one write at the HBM roofline; a Pallas path
    # would add pad/slice copies or fixed dispatch overhead.
    if width is None or n < min_pallas_elems:
        return _dispdec_ref(x)

    itemsize = jnp.dtype(dtype).itemsize
    sub = _sublane_multiple(dtype)
    rows = n // width

    max_blk_rows = max(sub, (_TARGET_TILE_BYTES // (width * itemsize)) // sub * sub)

    # Derive blk_rows from a step count (bounds the masked tail to < num_steps
    # * sub rows).  >= 4 steps, rounded to even, so v7x's two TensorCores each
    # get a balanced, pipelined share of the grid.
    num_steps = max(_MIN_STEPS, _cdiv(rows, max_blk_rows))
    num_steps += num_steps & 1
    blk_rows = _round_up(_cdiv(rows, num_steps), sub)
    if blk_rows >= rows:
        blk_rows = rows                      # single full-array block (tiny inputs)
    grid = (_cdiv(rows, blk_rows),)          # partial last block is masked by Pallas

    slab = x.reshape(rows, width)
    kernel = functools.partial(_dispdec_kernel, compute_dtype=_compute_dtype(dtype))

    out = pl.pallas_call(
        kernel,
        out_shape=jax.ShapeDtypeStruct((rows, width), dtype),
        grid_spec=pltpu.PrefetchScalarGridSpec(
            num_scalar_prefetch=0,
            grid=grid,
            in_specs=[pl.BlockSpec((blk_rows, width), lambda i: (i, 0))],
            out_specs=pl.BlockSpec((blk_rows, width), lambda i: (i, 0)),
        ),
        compiler_params=pltpu.CompilerParams(
            dimension_semantics=("parallel",),
        ),
        cost_estimate=pl.CostEstimate(
            flops=5 * n, transcendentals=2 * n, bytes_accessed=2 * n * itemsize),
        input_output_aliases=({0: 0} if donate else {}),
    )(slab)

    return out.reshape(orig_shape)


if __name__ == "__main__":
    key = jax.random.PRNGKey(0)
    k0, k1, k2, k3, k4 = jax.random.split(key, 5)

    # Canonical small NCHW input for the module (small-input XLA fallback).
    x_small = jax.random.normal(k0, (2, 4, 16, 16), dtype=jnp.float32) * 3.0
    y_small = disp_dec(x_small)

    # Force the Pallas kernel on the small input (single full-array block).
    y_small_pallas = disp_dec(x_small, min_pallas_elems=0)

    # Adaptive width: n=1536 -> W=512, full-dim (3, 512) block, no padding.
    x_w512 = jax.random.normal(k1, (2, 3, 16, 16), dtype=jnp.float32) * 3.0
    y_w512 = disp_dec(x_w512, min_pallas_elems=0)

    # Large aligned input: 4 balanced grid steps of (256, 1024) f32 tiles.
    x_big = jax.random.normal(k2, (2, 8, 256, 256), dtype=jnp.float32) * 4.0
    y_big = disp_dec(x_big)

    # rows=1030 not divisible by blk_rows -> masked partial last block, no pad.
    x_mask = jax.random.normal(k3, (5, 206, 1024), dtype=jnp.float32) * 4.0
    y_mask = disp_dec(x_mask)

    # bf16 input: softplus computed in bf16 (no upcast), HBM traffic stays bf16.
    x_bf16 = (jax.random.normal(k4, (2, 8, 256, 128), dtype=jnp.float32) * 3.0
              ).astype(jnp.bfloat16)
    y_bf16 = disp_dec(x_bf16)

    # Ragged size not divisible by 128 -> single-pass fused XLA fallback.
    x_rag = jax.random.normal(k0, (7, 11, 13), dtype=jnp.float32) * 3.0
    y_rag = disp_dec(x_rag)

    jax.block_until_ready((y_small, y_small_pallas, y_w512, y_big, y_mask,
                           y_bf16, y_rag))

    for got, inp in ((y_small, x_small), (y_small_pallas, x_small),
                     (y_w512, x_w512), (y_big, x_big), (y_mask, x_mask),
                     (y_rag, x_rag)):
        ref = _dispdec_ref(inp)
        assert got.shape == inp.shape
        assert got.dtype == inp.dtype
        assert jnp.allclose(got, ref, rtol=1e-6, atol=1e-6)

    ref_bf16 = _dispdec_ref(x_bf16)
    assert y_bf16.shape == x_bf16.shape and y_bf16.dtype == jnp.bfloat16
    assert jnp.allclose(y_bf16.astype(jnp.float32), ref_bf16.astype(jnp.float32),
                        rtol=5e-2, atol=1e-3)

    print("KERNEL_OK")
</pallas_src>

<mosaic_0001>
module attributes {stable_mosaic.version = 11 : i64} {
  func.func @_dispdec_kernel(%arg0: i32, %arg1: memref<2x1024xf32, #tpu.memory_space<vmem>>, %arg2: memref<2x1024xf32, #tpu.memory_space<vmem>>) attributes {dimension_semantics = [#tpu.dimension_semantics<parallel>], iteration_bounds = array<i64: 1>, scalar_prefetch = 0 : i64, scratch_operands = 0 : i64, tpu.core_type = #tpu.core_type<tc>, window_params = [{transform_indices = @transform_0, window_bounds = array<i64: 2, 1024>}, {transform_indices = @transform_1, window_bounds = array<i64: 2, 1024>}]} {
    %c0 = arith.constant 0 : index
    %c0_0 = arith.constant 0 : index
    %0 = vector.load %arg1[%c0, %c0_0] : memref<2x1024xf32, #tpu.memory_space<vmem>>, vector<2x1024xf32>
    %cst = arith.constant 0.000000e+00 : f32
    %1 = vector.broadcast %cst : f32 to vector<2x1024xf32>
    %2 = arith.maximumf %0, %1 : vector<2x1024xf32>
    %3 = math.absf %0 : vector<2x1024xf32>
    %cst_1 = arith.constant 0.000000e+00 : f32
    %4 = vector.broadcast %cst_1 : f32 to vector<2x1024xf32>
    %5 = arith.subf %4, %3 : vector<2x1024xf32>
    %6 = math.exp %5 : vector<2x1024xf32>
    %7 = math.log1p %6 : vector<2x1024xf32>
    %8 = arith.addf %2, %7 : vector<2x1024xf32>
    %cst_2 = arith.constant 9.99999974E-5 : f32
    %cst_3 = arith.constant 1.000000e+04 : f32
    %9 = vector.broadcast %cst_2 : f32 to vector<2x1024xf32>
    %10 = arith.maximumf %9, %8 : vector<2x1024xf32>
    %11 = vector.broadcast %cst_3 : f32 to vector<2x1024xf32>
    %12 = arith.minimumf %11, %10 : vector<2x1024xf32>
    %c0_4 = arith.constant 0 : index
    %c0_5 = arith.constant 0 : index
    %13 = vector.load %arg2[%c0_4, %c0_5] : memref<2x1024xf32, #tpu.memory_space<vmem>>, vector<2x1024xf32>
    tpu.vector_store %arg2[%c0_4, %c0_5], %12 {strides = array<i32>} : memref<2x1024xf32, #tpu.memory_space<vmem>>, vector<2x1024xf32>,
    return
  }
  func.func @transform_0(%arg0: i32) -> (i32, i32) {
    %c0_i32 = arith.constant 0 : i32
    %c0_i32_0 = arith.constant 0 : i32
    return %arg0, %c0_i32 : i32, i32
  }
  func.func @transform_1(%arg0: i32) -> (i32, i32) {
    %c0_i32 = arith.constant 0 : i32
    %c0_i32_0 = arith.constant 0 : i32
    return %arg0, %c0_i32 : i32, i32
  }
}

</mosaic_0001>

<llo_original>
// kernel: tpu_custom_call.1
$region0: #{tpu_custom_call.1}
  #allocation0 [shape = 'u32[]', space=smem, size = 0x4, offset = 0x4, fixed_abs, tag = 'smem constant byte address 0x4 - core index']
  #allocation1 [shape = 'u32[144,128]{1,0:T(1,128)}', space=vmem, size = 0x12000, scoped, tag = 'internal scratch']
  %s0 = inlined_call_operand.hbm [shape: f32[2,1024], index: 0, kind: input, shape index: {}]
  %s1 = inlined_call_operand.hbm [shape: f32[2,1024], index: 1, kind: output, shape index: {}]
  %s2 = sld [smem:[#allocation0]]
  $region18: #{tpu_custom_call.1} parent=0
    _
  %s4 = ssub.s32 1, %s2
  %s5 = scalar_select 0, %s4, %s2
  $region1: #{tpu_custom_call.1} parent=0
    #allocation2 [shape = 'u8[8192]{0}', space=vmem, size = 0x2000, scoped, tag = 'input window, operand 0, single buffered']
    #allocation3 [shape = 's32[1]{0}', space=sflag, size = 0x4, scoped, tag = 'scoped memory for tpu_custom_call.1']
    #allocation4 [shape = 's32[1]{0}', space=sflag, size = 0x4, scoped, tag = 'scoped memory for tpu_custom_call.1']
    #allocation5 [shape = 'u8[8192]{0}', space=vmem, size = 0x2000, scoped, tag = 'output window, operand 0, single buffered']
    %6 = vsyncpa [#allocation3], 0
    %7 = vsyncpa [#allocation4], 0
    // Predicated region
    $region2: #{tpu_custom_call.1} parent=1 // pred_check
      _
    $region3: #{tpu_custom_call.1} parent=1 // pred_check_branch
      %9 = sbr.rel (0) target = $region5
    $region4: #{tpu_custom_call.1} parent=1 // pred_region
      %s11 = ssub.s32 256, 256
      %12 = vsyncadd [#allocation3], %s11
      %s14 = sshll.u32 [#allocation2], 4
      %s15 = int_to_ptr.vmem [resolvable:$true] %s14
      %17 = dma.hbm_to_vmem [thread:$0]  %s0, 256, %s15, [#allocation3]
    $region5: #{tpu_custom_call.1} parent=1 // pred_fallthru
      _
    // Predicated region
    $region6: #{tpu_custom_call.1} parent=1 // pred_check
      _
    $region7: #{tpu_custom_call.1} parent=1 // pred_check_branch
      %19 = sbr.rel (0) target = $region9
    $region8: #{tpu_custom_call.1} parent=1 // pred_region
      %20 = dma.done [#allocation3], 256
    $region9: #{tpu_custom_call.1} parent=1 // pred_fallthru
      _
    %v21 = vld [vmem:[#allocation2] sm:$0xff]
    %v22 = vld [vmem:[#allocation2 + $0x8] sm:$0xff]
    %v23 = vmax.f32 %v21, 0.0
    %v24 = vmax.f32 %v22, 0.0
    %v25 = vand.u32 2147483647, %v21
    %v26 = vand.u32 2147483647, %v22
    %v27 = vsub.f32 0.0, %v25
    %v28 = vsub.f32 0.0, %v26
    %v29 = vmul.f32 %v27, 1.442695
    %v30 = vpow.pop %v29
    %v31 = vmul.f32 %v28, 1.442695
    %v32 = vpow.pop %v31
    %v33 = vadd.f32 %v30, 1.0
    %v34 = vlog2.pop %v33
    %v35 = vmul.f32 %v34, 0.6931472
    %v36 = vmul.f32 -0.5, %v30
    %v37 = vadd.f32 %v36, 1.0
    %v38 = vmul.f32 %v37, %v30
    %v39 = vand.u32 2147483647, %v30
    %vm40 = vcmp.lt.f32.partialorder %v39, 0.0004427343
    %v41 = vsel %vm40, %v38, %v35
    %v42 = vadd.f32 %v32, 1.0
    %v43 = vlog2.pop %v42
    %v44 = vmul.f32 %v43, 0.6931472
    %v45 = vmul.f32 -0.5, %v32
    %v46 = vadd.f32 %v45, 1.0
    %v47 = vmul.f32 %v46, %v32
    %v48 = vand.u32 2147483647, %v32
    %vm49 = vcmp.lt.f32.partialorder %v48, 0.0004427343
    %v50 = vsel %vm49, %v47, %v44
    %v51 = vadd.f32 %v23, %v41
    %v52 = vadd.f32 %v24, %v50
    %v53 = vmax.f32 %v51, 0.0001
    %v54 = vmax.f32 %v52, 0.0001
    %v55 = vmin.f32 %v53, 10000.0
    %v56 = vmin.f32 %v54, 10000.0
    %57 = vst [vmem:[#allocation5] sm:$0xff] %v55
    %58 = vst [vmem:[#allocation5 + $0x8] sm:$0xff] %v56
    // Predicated region
    $region10: #{tpu_custom_call.1} parent=1 // pred_check
      _
    $region11: #{tpu_custom_call.1} parent=1 // pred_check_branch
      %60 = sbr.rel (0) target = $region13
    $region12: #{tpu_custom_call.1} parent=1 // pred_region
      %s62 = ssub.s32 256, 256
      %63 = vsyncadd [#allocation4], %s62
      %s65 = sshll.u32 [#allocation5], 4
      %s66 = int_to_ptr.vmem [resolvable:$true] %s65
      %68 = dma.vmem_to_hbm [thread:$0]  %s66, 256, %s1, [#allocation4]
    $region13: #{tpu_custom_call.1} parent=1 // pred_fallthru
      _
    // Predicated region
    $region14: #{tpu_custom_call.1} parent=1 // pred_check
      _
    $region15: #{tpu_custom_call.1} parent=1 // pred_check_branch
      %70 = sbr.rel (0) target = $region17
    $region16: #{tpu_custom_call.1} parent=1 // pred_region
      %71 = dma.done [#allocation4], 256
    $region17: #{tpu_custom_call.1} parent=1 // pred_fallthru
      _
    %72 = vsyncpa [#allocation3], 1
    %73 = vsyncpa [#allocation4], 1

</llo_original>
